<compile_context>
chip_gen: v6e
topology: v6e:2x2x1
jax: 0.10.0
libtpu: 0.0.40
codegen_flags: <defaults>
</compile_context>

<pallas_src>
import jax
import jax.numpy as jnp
from jax import lax
from jax.experimental import pallas as pl
from jax.experimental.pallas import tpu as pltpu

N_CLASSES = 10
H_PAD = 128            # lane-dense padded width for hidden layers / logits
IN_FEATURES = 28 * 28
TB_MAX = 512           # batch-tile ceiling (bf16 tiles are tiny; safe on v7x 64 MiB VMEM)
NEG_INF = -1e30


def mlp_kernel(x_ref,
               w1_ref, b1_ref,
               w2_ref, b2_ref,
               w3_ref, b3_ref,
               w4_ref, b4_ref,
               o_ref):
    """One batch tile of the full MLP forward.

    x tile   : (TB, 784)  bf16
    weights  : bf16, zero-padded to lane-dense 128-wide layers, VMEM-resident
    biases   : f32 (1, 128)
    out tile : (TB, 128)  f32 -- columns >= 10 hold ~-1e30 junk, sliced off in wrapper
    """
    x = x_ref[...]                                                    # (TB, 784) bf16

    h = jnp.dot(x, w1_ref[...], preferred_element_type=jnp.float32) + b1_ref[...]
    h = jnp.maximum(h, 0.0).astype(jnp.bfloat16)                      # (TB, 128)

    h = jnp.dot(h, w2_ref[...], preferred_element_type=jnp.float32) + b2_ref[...]
    h = jnp.maximum(h, 0.0).astype(jnp.bfloat16)                      # (TB, 128)

    h = jnp.dot(h, w3_ref[...], preferred_element_type=jnp.float32) + b3_ref[...]
    h = jnp.maximum(h, 0.0).astype(jnp.bfloat16)                      # (TB, 128)

    z = jnp.dot(h, w4_ref[...], preferred_element_type=jnp.float32) + b4_ref[...]
    z = jnp.maximum(z, 0.0)                                           # (TB, 128) f32, ReLU per spec

    # Numerically stable log-softmax over the 10 real classes only: padded
    # lanes are pushed to -1e30 so they contribute nothing to max / denom.
    lane = lax.broadcasted_iota(jnp.int32, z.shape, 1)
    zm = jnp.where(lane < N_CLASSES, z, NEG_INF)
    m = jnp.max(zm, axis=1, keepdims=True)
    shifted = zm - m
    lse = jnp.log(jnp.sum(jnp.exp(shifted), axis=1, keepdims=True))
    o_ref[...] = (shifted - lse).astype(o_ref.dtype)


def init_params(key):
    """Deterministic PyTorch-style (uniform +-1/sqrt(fan_in)) init.

    Weights are stored as (in_features, out_features) so the kernel computes
    x @ W + b, matching torch.nn.Linear(x) = x @ W.T + b with W.T == our W.
    """
    dims = [(IN_FEATURES, 64), (64, 128), (128, 64), (64, N_CLASSES)]
    params = []
    for i, (fan_in, fan_out) in enumerate(dims):
        kw, kb = jax.random.split(jax.random.fold_in(key, i))
        bound = 1.0 / (fan_in ** 0.5)
        w = jax.random.uniform(kw, (fan_in, fan_out), jnp.float32, -bound, bound)
        b = jax.random.uniform(kb, (fan_out,), jnp.float32, -bound, bound)
        params += [w, b]
    return params


def _pad_params(w1, b1, w2, b2, w3, b3, w4, b4):
    """Zero-pad 64-wide dims to 128 lanes and cast weights to bf16 for the MXU.

    ReLU(0) = 0 and zero weight rows contribute nothing, so padding is inert;
    padded logit lanes are masked inside the kernel before the softmax.
    """
    def padw(w, rows, cols):
        return jnp.pad(w, ((0, rows - w.shape[0]),
                           (0, cols - w.shape[1]))).astype(jnp.bfloat16)

    def padb(b, cols):
        return jnp.pad(b, (0, cols - b.shape[0])).astype(jnp.float32).reshape(1, cols)

    return (padw(w1, IN_FEATURES, H_PAD), padb(b1, H_PAD),
            padw(w2, H_PAD, H_PAD),       padb(b2, H_PAD),
            padw(w3, H_PAD, H_PAD),       padb(b3, H_PAD),
            padw(w4, H_PAD, H_PAD),       padb(b4, H_PAD))


def _round_up(n, m):
    return ((n + m - 1) // m) * m


@jax.jit
def net_forward(x, w1, b1, w2, b2, w3, b3, w4, b4):
    batch = x.shape[0]
    x_flat = x.reshape(batch, -1).astype(jnp.bfloat16)                # (B, 784) bf16

    # Batch tile: multiple of 8 sublanes, capped so tiles stay small on v7x.
    tb = min(TB_MAX, _round_up(batch, 8))
    bp = _round_up(batch, tb)
    if bp != batch:
        x_flat = jnp.pad(x_flat, ((0, bp - batch), (0, 0)))

    padded = _pad_params(w1, b1, w2, b2, w3, b3, w4, b4)
    n_tiles = bp // tb

    in_specs = [pl.BlockSpec((tb, IN_FEATURES), lambda i: (i, 0))]
    # Weights/biases: full blocks, constant index_map -> stay resident in VMEM.
    in_specs += [pl.BlockSpec(p.shape, lambda i: (0, 0)) for p in padded]

    flops = 2 * bp * (IN_FEATURES * H_PAD + 3 * H_PAD * H_PAD)
    bytes_accessed = (x_flat.size * 2
                      + sum(int(p.size) * p.dtype.itemsize for p in padded)
                      + bp * H_PAD * 4)

    out_padded = pl.pallas_call(
        mlp_kernel,
        out_shape=jax.ShapeDtypeStruct((bp, H_PAD), jnp.float32),
        grid=(n_tiles,),
        in_specs=in_specs,
        out_specs=pl.BlockSpec((tb, H_PAD), lambda i: (i, 0)),
        compiler_params=pltpu.CompilerParams(
            dimension_semantics=("parallel",)),
        cost_estimate=pl.CostEstimate(
            flops=flops,
            transcendentals=bp * H_PAD,
            bytes_accessed=bytes_accessed),
    )(x_flat, *padded)

    return out_padded[:batch, :N_CLASSES]


def reference_forward(x, w1, b1, w2, b2, w3, b3, w4, b4):
    """Pure-JAX f32 reference matching the PyTorch module exactly."""
    h = x.reshape(x.shape[0], -1).astype(jnp.float32)
    for w, b in [(w1, b1), (w2, b2), (w3, b3), (w4, b4)]:
        h = jnp.maximum(h @ w + b, 0.0)
    return jax.nn.log_softmax(h, axis=1)


if __name__ == "__main__":
    key = jax.random.PRNGKey(0)
    k_x, k_p = jax.random.split(key)

    batch = 64  # matches the PyTorch script's batch_size
    x = jax.random.normal(k_x, (batch, 1, 28, 28), jnp.float32)
    params = init_params(k_p)

    out = jax.block_until_ready(net_forward(x, *params))
    ref = reference_forward(x, *params)

    assert out.shape == (batch, N_CLASSES)
    assert bool(jnp.all(jnp.isfinite(out)))
    # bf16 matmul operands (f32 accumulation) -> loose-ish tolerance vs f32 ref.
    err = float(jnp.max(jnp.abs(out - ref)))
    assert err < 5e-2, f"mismatch vs reference: max abs err = {err}"

    print("KERNEL_OK")
</pallas_src>

<mosaic_0001>
module attributes {stable_mosaic.version = 11 : i64} {
  func.func @mlp_kernel(%arg0: i32, %arg1: memref<64x784xbf16, #tpu.memory_space<vmem>>, %arg2: memref<784x128xbf16, #tpu.memory_space<vmem>>, %arg3: memref<1x128xf32, #tpu.memory_space<vmem>>, %arg4: memref<128x128xbf16, #tpu.memory_space<vmem>>, %arg5: memref<1x128xf32, #tpu.memory_space<vmem>>, %arg6: memref<128x128xbf16, #tpu.memory_space<vmem>>, %arg7: memref<1x128xf32, #tpu.memory_space<vmem>>, %arg8: memref<128x128xbf16, #tpu.memory_space<vmem>>, %arg9: memref<1x128xf32, #tpu.memory_space<vmem>>, %arg10: memref<64x128xf32, #tpu.memory_space<vmem>>) attributes {dimension_semantics = [#tpu.dimension_semantics<parallel>], iteration_bounds = array<i64: 1>, scalar_prefetch = 0 : i64, scratch_operands = 0 : i64, tpu.core_type = #tpu.core_type<tc>, window_params = [{transform_indices = @transform_0, window_bounds = array<i64: 64, 784>}, {pipeline_mode = #tpu.pipeline_mode<synchronous>, transform_indices = @transform_1, window_bounds = array<i64: 784, 128>}, {pipeline_mode = #tpu.pipeline_mode<synchronous>, transform_indices = @transform_2, window_bounds = array<i64: 1, 128>}, {pipeline_mode = #tpu.pipeline_mode<synchronous>, transform_indices = @transform_3, window_bounds = array<i64: 128, 128>}, {pipeline_mode = #tpu.pipeline_mode<synchronous>, transform_indices = @transform_4, window_bounds = array<i64: 1, 128>}, {pipeline_mode = #tpu.pipeline_mode<synchronous>, transform_indices = @transform_5, window_bounds = array<i64: 128, 128>}, {pipeline_mode = #tpu.pipeline_mode<synchronous>, transform_indices = @transform_6, window_bounds = array<i64: 1, 128>}, {pipeline_mode = #tpu.pipeline_mode<synchronous>, transform_indices = @transform_7, window_bounds = array<i64: 128, 128>}, {pipeline_mode = #tpu.pipeline_mode<synchronous>, transform_indices = @transform_8, window_bounds = array<i64: 1, 128>}, {transform_indices = @transform_9, window_bounds = array<i64: 64, 128>}]} {
    %c0 = arith.constant 0 : index
    %c0_0 = arith.constant 0 : index
    %0 = vector.load %arg1[%c0, %c0_0] : memref<64x784xbf16, #tpu.memory_space<vmem>>, vector<64x784xbf16>
    %c0_1 = arith.constant 0 : index
    %c0_2 = arith.constant 0 : index
    %1 = vector.load %arg2[%c0_1, %c0_2] : memref<784x128xbf16, #tpu.memory_space<vmem>>, vector<784x128xbf16>
    %cst = arith.constant dense<0.000000e+00> : vector<64x128xf32>
    %2 = tpu.matmul %0, %1, %cst {dimension_numbers = #tpu.dot_dimension_numbers<[1], [0], [0], [1], [0, 0, 1, 1], [], []>} : vector<64x784xbf16>, vector<784x128xbf16>, vector<64x128xf32> -> vector<64x128xf32>
    %c0_3 = arith.constant 0 : index
    %c0_4 = arith.constant 0 : index
    %3 = vector.load %arg3[%c0_3, %c0_4] : memref<1x128xf32, #tpu.memory_space<vmem>>, vector<1x128xf32>
    %4 = vector.broadcast %3 : vector<1x128xf32> to vector<64x128xf32>
    %5 = arith.addf %2, %4 : vector<64x128xf32>
    %cst_5 = arith.constant 0.000000e+00 : f32
    %6 = vector.broadcast %cst_5 : f32 to vector<64x128xf32>
    %7 = arith.maximumf %5, %6 : vector<64x128xf32>
    %8 = arith.truncf %7 : vector<64x128xf32> to vector<64x128xbf16>
    %c0_6 = arith.constant 0 : index
    %c0_7 = arith.constant 0 : index
    %9 = vector.load %arg4[%c0_6, %c0_7] : memref<128x128xbf16, #tpu.memory_space<vmem>>, vector<128x128xbf16>
    %cst_8 = arith.constant dense<0.000000e+00> : vector<64x128xf32>
    %10 = tpu.matmul %8, %9, %cst_8 {dimension_numbers = #tpu.dot_dimension_numbers<[1], [0], [0], [1], [0, 0, 1, 1], [], []>} : vector<64x128xbf16>, vector<128x128xbf16>, vector<64x128xf32> -> vector<64x128xf32>
    %c0_9 = arith.constant 0 : index
    %c0_10 = arith.constant 0 : index
    %11 = vector.load %arg5[%c0_9, %c0_10] : memref<1x128xf32, #tpu.memory_space<vmem>>, vector<1x128xf32>
    %12 = vector.broadcast %11 : vector<1x128xf32> to vector<64x128xf32>
    %13 = arith.addf %10, %12 : vector<64x128xf32>
    %cst_11 = arith.constant 0.000000e+00 : f32
    %14 = vector.broadcast %cst_11 : f32 to vector<64x128xf32>
    %15 = arith.maximumf %13, %14 : vector<64x128xf32>
    %16 = arith.truncf %15 : vector<64x128xf32> to vector<64x128xbf16>
    %c0_12 = arith.constant 0 : index
    %c0_13 = arith.constant 0 : index
    %17 = vector.load %arg6[%c0_12, %c0_13] : memref<128x128xbf16, #tpu.memory_space<vmem>>, vector<128x128xbf16>
    %cst_14 = arith.constant dense<0.000000e+00> : vector<64x128xf32>
    %18 = tpu.matmul %16, %17, %cst_14 {dimension_numbers = #tpu.dot_dimension_numbers<[1], [0], [0], [1], [0, 0, 1, 1], [], []>} : vector<64x128xbf16>, vector<128x128xbf16>, vector<64x128xf32> -> vector<64x128xf32>
    %c0_15 = arith.constant 0 : index
    %c0_16 = arith.constant 0 : index
    %19 = vector.load %arg7[%c0_15, %c0_16] : memref<1x128xf32, #tpu.memory_space<vmem>>, vector<1x128xf32>
    %20 = vector.broadcast %19 : vector<1x128xf32> to vector<64x128xf32>
    %21 = arith.addf %18, %20 : vector<64x128xf32>
    %cst_17 = arith.constant 0.000000e+00 : f32
    %22 = vector.broadcast %cst_17 : f32 to vector<64x128xf32>
    %23 = arith.maximumf %21, %22 : vector<64x128xf32>
    %24 = arith.truncf %23 : vector<64x128xf32> to vector<64x128xbf16>
    %c0_18 = arith.constant 0 : index
    %c0_19 = arith.constant 0 : index
    %25 = vector.load %arg8[%c0_18, %c0_19] : memref<128x128xbf16, #tpu.memory_space<vmem>>, vector<128x128xbf16>
    %cst_20 = arith.constant dense<0.000000e+00> : vector<64x128xf32>
    %26 = tpu.matmul %24, %25, %cst_20 {dimension_numbers = #tpu.dot_dimension_numbers<[1], [0], [0], [1], [0, 0, 1, 1], [], []>} : vector<64x128xbf16>, vector<128x128xbf16>, vector<64x128xf32> -> vector<64x128xf32>
    %c0_21 = arith.constant 0 : index
    %c0_22 = arith.constant 0 : index
    %27 = vector.load %arg9[%c0_21, %c0_22] : memref<1x128xf32, #tpu.memory_space<vmem>>, vector<1x128xf32>
    %28 = vector.broadcast %27 : vector<1x128xf32> to vector<64x128xf32>
    %29 = arith.addf %26, %28 : vector<64x128xf32>
    %cst_23 = arith.constant 0.000000e+00 : f32
    %30 = vector.broadcast %cst_23 : f32 to vector<64x128xf32>
    %31 = arith.maximumf %29, %30 : vector<64x128xf32>
    %32 = tpu.iota {dimensions = array<i32: 1>} : vector<64x128xi32>
    %c10_i32 = arith.constant 10 : i32
    %33 = vector.broadcast %c10_i32 : i32 to vector<64x128xi32>
    %34 = arith.cmpi slt, %32, %33 : vector<64x128xi32>
    %cst_24 = arith.constant -1.000000e+30 : f32
    %35 = vector.broadcast %cst_24 : f32 to vector<64x128xf32>
    %36 = arith.select %34, %31, %35 : vector<64x128xi1>, vector<64x128xf32>
    %cst_25 = arith.constant dense<0xFF800000> : vector<64xf32>
    %37 = vector.multi_reduction <maximumf>, %36, %cst_25 [1] : vector<64x128xf32> to vector<64xf32>
    %38 = vector.shape_cast %37 : vector<64xf32> to vector<64x1xf32>
    %39 = vector.broadcast %38 : vector<64x1xf32> to vector<64x128xf32>
    %40 = arith.subf %36, %39 : vector<64x128xf32>
    %41 = math.exp %40 : vector<64x128xf32>
    %cst_26 = arith.constant dense<0.000000e+00> : vector<64xf32>
    %42 = vector.multi_reduction <add>, %41, %cst_26 [1] : vector<64x128xf32> to vector<64xf32>
    %43 = vector.shape_cast %42 : vector<64xf32> to vector<64x1xf32>
    %44 = math.log %43 : vector<64x1xf32>
    %45 = vector.broadcast %44 : vector<64x1xf32> to vector<64x128xf32>
    %46 = arith.subf %40, %45 : vector<64x128xf32>
    %c0_27 = arith.constant 0 : index
    %c0_28 = arith.constant 0 : index
    %47 = vector.load %arg10[%c0_27, %c0_28] : memref<64x128xf32, #tpu.memory_space<vmem>>, vector<64x128xf32>
    tpu.vector_store %arg10[%c0_27, %c0_28], %46 {strides = array<i32>} : memref<64x128xf32, #tpu.memory_space<vmem>>, vector<64x128xf32>,
    return
  }
  func.func @transform_0(%arg0: i32) -> (i32, i32) {
    %c0_i32 = arith.constant 0 : i32
    %c0_i32_0 = arith.constant 0 : i32
    return %arg0, %c0_i32 : i32, i32
  }
  func.func @transform_1(%arg0: i32) -> (i32, i32) {
    %c0_i32 = arith.constant 0 : i32
    %c0_i32_0 = arith.constant 0 : i32
    %c0_i32_1 = arith.constant 0 : i32
    return %c0_i32, %c0_i32_0 : i32, i32
  }
  func.func @transform_2(%arg0: i32) -> (i32, i32) {
    %c0_i32 = arith.constant 0 : i32
    %c0_i32_0 = arith.constant 0 : i32
    %c0_i32_1 = arith.constant 0 : i32
    return %c0_i32, %c0_i32_0 : i32, i32
  }
  func.func @transform_3(%arg0: i32) -> (i32, i32) {
    %c0_i32 = arith.constant 0 : i32
    %c0_i32_0 = arith.constant 0 : i32
    %c0_i32_1 = arith.constant 0 : i32
    return %c0_i32, %c0_i32_0 : i32, i32
  }
  func.func @transform_4(%arg0: i32) -> (i32, i32) {
    %c0_i32 = arith.constant 0 : i32
    %c0_i32_0 = arith.constant 0 : i32
    %c0_i32_1 = arith.constant 0 : i32
    return %c0_i32, %c0_i32_0 : i32, i32
  }
  func.func @transform_5(%arg0: i32) -> (i32, i32) {
    %c0_i32 = arith.constant 0 : i32
    %c0_i32_0 = arith.constant 0 : i32
    %c0_i32_1 = arith.constant 0 : i32
    return %c0_i32, %c0_i32_0 : i32, i32
  }
  func.func @transform_6(%arg0: i32) -> (i32, i32) {
    %c0_i32 = arith.constant 0 : i32
    %c0_i32_0 = arith.constant 0 : i32
    %c0_i32_1 = arith.constant 0 : i32
    return %c0_i32, %c0_i32_0 : i32, i32
  }
  func.func @transform_7(%arg0: i32) -> (i32, i32) {
    %c0_i32 = arith.constant 0 : i32
    %c0_i32_0 = arith.constant 0 : i32
    %c0_i32_1 = arith.constant 0 : i32
    return %c0_i32, %c0_i32_0 : i32, i32
  }
  func.func @transform_8(%arg0: i32) -> (i32, i32) {
    %c0_i32 = arith.constant 0 : i32
    %c0_i32_0 = arith.constant 0 : i32
    %c0_i32_1 = arith.constant 0 : i32
    return %c0_i32, %c0_i32_0 : i32, i32
  }
  func.func @transform_9(%arg0: i32) -> (i32, i32) {
    %c0_i32 = arith.constant 0 : i32
    %c0_i32_0 = arith.constant 0 : i32
    return %arg0, %c0_i32 : i32, i32
  }
}

</mosaic_0001>

<llo_original>
// kernel: net_forward.1
$region0: #{net_forward.1}
  #allocation0 [shape = 'u32[]', space=smem, size = 0x4, offset = 0x4, fixed_abs, tag = 'smem constant byte address 0x4 - core index']
  #allocation1 [shape = 'u32[144,128]{1,0:T(1,128)}', space=vmem, size = 0x12000, scoped, tag = 'internal scratch']
  %s0 = inlined_call_operand.vmem [shape: bf16[64,784], index: 0, kind: input, shape index: {}]
  %s1 = inlined_call_operand.vmem [shape: bf16[784,128], index: 1, kind: input, shape index: {}]
  %s2 = inlined_call_operand.vmem [shape: f32[1,128], index: 2, kind: input, shape index: {}]
  %s3 = inlined_call_operand.vmem [shape: bf16[128,128], index: 3, kind: input, shape index: {}]
  %s4 = inlined_call_operand.vmem [shape: f32[1,128], index: 4, kind: input, shape index: {}]
  %s5 = inlined_call_operand.vmem [shape: bf16[128,128], index: 5, kind: input, shape index: {}]
  %s6 = inlined_call_operand.vmem [shape: f32[1,128], index: 6, kind: input, shape index: {}]
  %s7 = inlined_call_operand.vmem [shape: bf16[128,128], index: 7, kind: input, shape index: {}]
  %s8 = inlined_call_operand.vmem [shape: f32[1,128], index: 8, kind: input, shape index: {}]
  %s9 = inlined_call_operand.vmem [shape: f32[64,128], index: 9, kind: output, shape index: {}]
  %s10 = sld [smem:[#allocation0]]
  $region46: #{net_forward.1} parent=0
    _
  %s12 = ssub.s32 1, %s10
  %s13 = scalar_select 0, %s12, %s10
  // Predicated region
  $region2: #{net_forward.1} parent=0 // pred_check
    _
  $region3: #{net_forward.1} parent=0 // pred_check_branch
    %15 = sbr.rel (0) target = $region5
  $region4: #{net_forward.1} parent=0 // pred_region
    _
  $region5: #{net_forward.1} parent=0 // pred_fallthru
    _
  // Predicated region
  $region6: #{net_forward.1} parent=0 // pred_check
    _
  $region7: #{net_forward.1} parent=0 // pred_check_branch
    %17 = sbr.rel (0) target = $region9
  $region8: #{net_forward.1} parent=0 // pred_region
    _
  $region9: #{net_forward.1} parent=0 // pred_fallthru
    _
  // Predicated region
  $region10: #{net_forward.1} parent=0 // pred_check
    _
  $region11: #{net_forward.1} parent=0 // pred_check_branch
    %19 = sbr.rel (0) target = $region13
  $region12: #{net_forward.1} parent=0 // pred_region
    _
  $region13: #{net_forward.1} parent=0 // pred_fallthru
    _
  // Predicated region
  $region14: #{net_forward.1} parent=0 // pred_check
    _
  $region15: #{net_forward.1} parent=0 // pred_check_branch
    %21 = sbr.rel (0) target = $region17
  $region16: #{net_forward.1} parent=0 // pred_region
    _
  $region17: #{net_forward.1} parent=0 // pred_fallthru
    _
  // Predicated region
  $region18: #{net_forward.1} parent=0 // pred_check
    _
  $region19: #{net_forward.1} parent=0 // pred_check_branch
    %23 = sbr.rel (0) target = $region21
  $region20: #{net_forward.1} parent=0 // pred_region
    _
  $region21: #{net_forward.1} parent=0 // pred_fallthru
    _
  // Predicated region
  $region22: #{net_forward.1} parent=0 // pred_check
    _
  $region23: #{net_forward.1} parent=0 // pred_check_branch
    %25 = sbr.rel (0) target = $region25
  $region24: #{net_forward.1} parent=0 // pred_region
    _
  $region25: #{net_forward.1} parent=0 // pred_fallthru
    _
  // Predicated region
  $region26: #{net_forward.1} parent=0 // pred_check
    _
  $region27: #{net_forward.1} parent=0 // pred_check_branch
    %27 = sbr.rel (0) target = $region29
  $region28: #{net_forward.1} parent=0 // pred_region
    _
  $region29: #{net_forward.1} parent=0 // pred_fallthru
    _
  // Predicated region
  $region30: #{net_forward.1} parent=0 // pred_check
    _
  $region31: #{net_forward.1} parent=0 // pred_check_branch
    %29 = sbr.rel (0) target = $region33
  $region32: #{net_forward.1} parent=0 // pred_region
    _
  $region33: #{net_forward.1} parent=0 // pred_fallthru
    _
  // Predicated region
  $region34: #{net_forward.1} parent=0 // pred_check
    _
  $region35: #{net_forward.1} parent=0 // pred_check_branch
    %31 = sbr.rel (0) target = $region37
  $region36: #{net_forward.1} parent=0 // pred_region
    _
  $region37: #{net_forward.1} parent=0 // pred_fallthru
    _
  %v33 = vld [vmem:[%s0] sm:$0xff]
  %v34 = vld [vmem:[%s0 + $0x8] sm:$0xff]
  %v35 = vld [vmem:[%s0 + $0x10] sm:$0xff]
  %v36 = vld [vmem:[%s0 + $0x18] sm:$0xf]
  %v37 = vld [vmem:[%s0 + $0x1c] sm:$0xff]
  %v38 = vld [vmem:[%s0 + $0x24] sm:$0xff]
  %v39 = vld [vmem:[%s0 + $0x2c] sm:$0xff]
  %v40 = vld [vmem:[%s0 + $0x34] sm:$0xf]
  %v41 = vld [vmem:[%s0 + $0x38] sm:$0xff]
  %v42 = vld [vmem:[%s0 + $0x40] sm:$0xff]
  %v43 = vld [vmem:[%s0 + $0x48] sm:$0xff]
  %v44 = vld [vmem:[%s0 + $0x50] sm:$0xf]
  %v45 = vld [vmem:[%s0 + $0x54] sm:$0xff]
  %v46 = vld [vmem:[%s0 + $0x5c] sm:$0xff]
  %v47 = vld [vmem:[%s0 + $0x64] sm:$0xff]
  %v48 = vld [vmem:[%s0 + $0x6c] sm:$0xf]
  %v49 = vld [vmem:[%s0 + $0x70] sm:$0xff]
  %v50 = vld [vmem:[%s0 + $0x78] sm:$0xff]
  %v51 = vld [vmem:[%s0 + $0x80] sm:$0xff]
  %v52 = vld [vmem:[%s0 + $0x88] sm:$0xf]
  %v53 = vld [vmem:[%s0 + $0x8c] sm:$0xff]
  %v54 = vld [vmem:[%s0 + $0x94] sm:$0xff]
  %v55 = vld [vmem:[%s0 + $0x9c] sm:$0xff]
  %v56 = vld [vmem:[%s0 + $0xa4] sm:$0xf]
  %v57 = vld [vmem:[%s0 + $0xa8] sm:$0xff]
  %v58 = vld [vmem:[%s0 + $0xb0] sm:$0xff]
  %v59 = vld [vmem:[%s0 + $0xb8] sm:$0xff]
  %v60 = vld [vmem:[%s0 + $0xc0] sm:$0xf]
  %v61 = vld [vmem:[%s0 + $0xc4] sm:$0xff]
  %v62 = vld [vmem:[%s0 + $0xcc] sm:$0xff]
  %v63 = vld [vmem:[%s0 + $0xd4] sm:$0xff]
  %v64 = vld [vmem:[%s0 + $0xdc] sm:$0xf]
  %v65 = vld [vmem:[%s1] sm:$0xf]
  %v66 = vld [vmem:[%s1 + $0x4] sm:$0xf]
  %v67 = vld [vmem:[%s1 + $0x8] sm:$0xf]
  %v68 = vld [vmem:[%s1 + $0xc] sm:$0xf]
  %v69 = vld [vmem:[%s1 + $0x10] sm:$0xf]
  %v70 = vld [vmem:[%s1 + $0x14] sm:$0xf]
  %v71 = vld [vmem:[%s1 + $0x18] sm:$0xf]
  %v72 = vld [vmem:[%s1 + $0x1c] sm:$0xf]
  %v73 = vld [vmem:[%s1 + $0x20] sm:$0xf]
  %v74 = vld [vmem:[%s1 + $0x24] sm:$0xf]
  %v75 = vld [vmem:[%s1 + $0x28] sm:$0xf]
  %v76 = vld [vmem:[%s1 + $0x2c] sm:$0xf]
  %v77 = vld [vmem:[%s1 + $0x30] sm:$0xf]
  %v78 = vld [vmem:[%s1 + $0x34] sm:$0xf]
  %v79 = vld [vmem:[%s1 + $0x38] sm:$0xf]
  %v80 = vld [vmem:[%s1 + $0x3c] sm:$0xf]
  %v81 = vld [vmem:[%s1 + $0x40] sm:$0xf]
  %v82 = vld [vmem:[%s1 + $0x44] sm:$0xf]
  %v83 = vld [vmem:[%s1 + $0x48] sm:$0xf]
  %v84 = vld [vmem:[%s1 + $0x4c] sm:$0xf]
  %v85 = vld [vmem:[%s1 + $0x50] sm:$0xf]
  %v86 = vld [vmem:[%s1 + $0x54] sm:$0xf]
  %v87 = vld [vmem:[%s1 + $0x58] sm:$0xf]
  %v88 = vld [vmem:[%s1 + $0x5c] sm:$0xf]
  %v89 = vld [vmem:[%s1 + $0x60] sm:$0xf]
  %v90 = vld [vmem:[%s1 + $0x64] sm:$0xf]
  %v91 = vld [vmem:[%s1 + $0x68] sm:$0xf]
  %v92 = vld [vmem:[%s1 + $0x6c] sm:$0xf]
  %v93 = vld [vmem:[%s1 + $0x70] sm:$0xf]
  %v94 = vld [vmem:[%s1 + $0x74] sm:$0xf]
  %v95 = vld [vmem:[%s1 + $0x78] sm:$0xf]
  %v96 = vld [vmem:[%s1 + $0x7c] sm:$0xf]
  %v97 = vld [vmem:[%s1 + $0x80] sm:$0xf]
  %v98 = vld [vmem:[%s1 + $0x84] sm:$0xf]
  %v99 = vld [vmem:[%s1 + $0x88] sm:$0xf]
  %v100 = vld [vmem:[%s1 + $0x8c] sm:$0xf]
  %v101 = vld [vmem:[%s1 + $0x90] sm:$0xf]
  %v102 = vld [vmem:[%s1 + $0x94] sm:$0xf]
  %v103 = vld [vmem:[%s1 + $0x98] sm:$0xf]
  %v104 = vld [vmem:[%s1 + $0x9c] sm:$0xf]
  %v105 = vld [vmem:[%s1 + $0xa0] sm:$0xf]
  %v106 = vld [vmem:[%s1 + $0xa4] sm:$0xf]
  %v107 = vld [vmem:[%s1 + $0xa8] sm:$0xf]
  %v108 = vld [vmem:[%s1 + $0xac] sm:$0xf]
  %v109 = vld [vmem:[%s1 + $0xb0] sm:$0xf]
  %v110 = vld [vmem:[%s1 + $0xb4] sm:$0xf]
  %v111 = vld [vmem:[%s1 + $0xb8] sm:$0xf]
  %v112 = vld [vmem:[%s1 + $0xbc] sm:$0xf]
  %v113 = vld [vmem:[%s1 + $0xc0] sm:$0xf]
  %v114 = vld [vmem:[%s1 + $0xc4] sm:$0xf]
  %v115 = vld [vmem:[%s1 + $0xc8] sm:$0xf]
  %v116 = vld [vmem:[%s1 + $0xcc] sm:$0xf]
  %v117 = vld [vmem:[%s1 + $0xd0] sm:$0xf]
  %v118 = vld [vmem:[%s1 + $0xd4] sm:$0xf]
  %v119 = vld [vmem:[%s1 + $0xd8] sm:$0xf]
  %v120 = vld [vmem:[%s1 + $0xdc] sm:$0xf]
  %v121 = vld [vmem:[%s1 + $0xe0] sm:$0xf]
  %v122 = vld [vmem:[%s1 + $0xe4] sm:$0xf]
  %v123 = vld [vmem:[%s1 + $0xe8] sm:$0xf]
  %v124 = vld [vmem:[%s1 + $0xec] sm:$0xf]
  %v125 = vld [vmem:[%s1 + $0xf0] sm:$0xf]
  %v126 = vld [vmem:[%s1 + $0xf4] sm:$0xf]
  %v127 = vld [vmem:[%s1 + $0xf8] sm:$0xf]
  %v128 = vld [vmem:[%s1 + $0xfc] sm:$0xf]
  %v129 = vld [vmem:[%s1 + $0x100] sm:$0xf]
  %v130 = vld [vmem:[%s1 + $0x104] sm:$0xf]
  %v131 = vld [vmem:[%s1 + $0x108] sm:$0xf]
  %v132 = vld [vmem:[%s1 + $0x10c] sm:$0xf]
  %v133 = vld [vmem:[%s1 + $0x110] sm:$0xf]
  %v134 = vld [vmem:[%s1 + $0x114] sm:$0xf]
  %v135 = vld [vmem:[%s1 + $0x118] sm:$0xf]
  %v136 = vld [vmem:[%s1 + $0x11c] sm:$0xf]
  %v137 = vld [vmem:[%s1 + $0x120] sm:$0xf]
  %v138 = vld [vmem:[%s1 + $0x124] sm:$0xf]
  %v139 = vld [vmem:[%s1 + $0x128] sm:$0xf]
  %v140 = vld [vmem:[%s1 + $0x12c] sm:$0xf]
  %v141 = vld [vmem:[%s1 + $0x130] sm:$0xf]
  %v142 = vld [vmem:[%s1 + $0x134] sm:$0xf]
  %v143 = vld [vmem:[%s1 + $0x138] sm:$0xf]
  %v144 = vld [vmem:[%s1 + $0x13c] sm:$0xf]
  %v145 = vld [vmem:[%s1 + $0x140] sm:$0xf]
  %v146 = vld [vmem:[%s1 + $0x144] sm:$0xf]
  %v147 = vld [vmem:[%s1 + $0x148] sm:$0xf]
  %v148 = vld [vmem:[%s1 + $0x14c] sm:$0xf]
  %v149 = vld [vmem:[%s1 + $0x150] sm:$0xf]
  %v150 = vld [vmem:[%s1 + $0x154] sm:$0xf]
  %v151 = vld [vmem:[%s1 + $0x158] sm:$0xf]
  %v152 = vld [vmem:[%s1 + $0x15c] sm:$0xf]
  %v153 = vld [vmem:[%s1 + $0x160] sm:$0xf]
  %v154 = vld [vmem:[%s1 + $0x164] sm:$0xf]
  %v155 = vld [vmem:[%s1 + $0x168] sm:$0xf]
  %v156 = vld [vmem:[%s1 + $0x16c] sm:$0xf]
  %v157 = vld [vmem:[%s1 + $0x170] sm:$0xf]
  %v158 = vld [vmem:[%s1 + $0x174] sm:$0xf]
  %v159 = vld [vmem:[%s1 + $0x178] sm:$0xf]
  %v160 = vld [vmem:[%s1 + $0x17c] sm:$0xf]
  %v161 = vld [vmem:[%s1 + $0x180] sm:$0xf]
  %v162 = vld [vmem:[%s1 + $0x184] sm:$0xf]
  %v163 = vld [vmem:[%s2] sm:$0x1]
  %v165 = vlaneseq
  %v166 = vshrl.u32 %v165, 7
  %v167 = vsub.s32 0, %v166
  %v168 = vrot.slane %v163, %v167
  %v202 = vunpack.c.l.b16 %v33
  %v203 = vunpack.c.h.b16 %v33
  %v204 = vunpack.c.l.b16 %v34
  %v205 = vunpack.c.h.b16 %v34
  %v206 = vunpack.c.l.b16 %v35
  %v207 = vunpack.c.h.b16 %v35
  %v208 = vunpack.c.l.b16 %v36
  %v209 = vunpack.c.l.b16 %v37
  %v210 = vunpack.c.h.b16 %v37
  %v211 = vunpack.c.l.b16 %v38
  %v212 = vunpack.c.h.b16 %v38
  %v213 = vunpack.c.l.b16 %v39
  %v214 = vunpack.c.h.b16 %v39
  %v215 = vunpack.c.l.b16 %v40
  %v216 = vunpack.c.l.b16 %v41
  %v217 = vunpack.c.h.b16 %v41
  %v218 = vunpack.c.l.b16 %v42
  %v219 = vunpack.c.h.b16 %v42
  %v220 = vunpack.c.l.b16 %v43
  %v221 = vunpack.c.h.b16 %v43
  %v222 = vunpack.c.l.b16 %v44
  %v223 = vunpack.c.l.b16 %v45
  %v224 = vunpack.c.h.b16 %v45
  %v225 = vunpack.c.l.b16 %v46
  %v226 = vunpack.c.h.b16 %v46
  %v227 = vunpack.c.l.b16 %v47
  %v228 = vunpack.c.h.b16 %v47
  %v229 = vunpack.c.l.b16 %v48
  %v230 = vunpack.c.l.b16 %v49
  %v231 = vunpack.c.h.b16 %v49
  %v232 = vunpack.c.l.b16 %v50
  %v233 = vunpack.c.h.b16 %v50
  %v234 = vunpack.c.l.b16 %v51
  %v235 = vunpack.c.h.b16 %v51
  %v236 = vunpack.c.l.b16 %v52
  %v237 = vunpack.c.l.b16 %v53
  %v238 = vunpack.c.h.b16 %v53
  %v239 = vunpack.c.l.b16 %v54
  %v240 = vunpack.c.h.b16 %v54
  %v241 = vunpack.c.l.b16 %v55
  %v242 = vunpack.c.h.b16 %v55
  %v243 = vunpack.c.l.b16 %v56
  %v244 = vunpack.c.l.b16 %v57
  %v245 = vunpack.c.h.b16 %v57
  %v246 = vunpack.c.l.b16 %v58
  %v247 = vunpack.c.h.b16 %v58
  %v248 = vunpack.c.l.b16 %v59
  %v249 = vunpack.c.h.b16 %v59
  %v250 = vunpack.c.l.b16 %v60
  %v251 = vunpack.c.l.b16 %v61
  %v252 = vunpack.c.h.b16 %v61
  %v253 = vunpack.c.l.b16 %v62
  %v254 = vunpack.c.h.b16 %v62
  %v255 = vunpack.c.l.b16 %v63
  %v256 = vunpack.c.h.b16 %v63
  %v257 = vunpack.c.l.b16 %v64
  %v258 = vpack.c.b16 %v209, %v202
  %v259 = vpack.c.b16 %v210, %v203
  %v260 = vpack.c.b16 %v211, %v204
  %v261 = vpack.c.b16 %v212, %v205
  %v262 = vpack.c.b16 %v213, %v206
  %v263 = vpack.c.b16 %v214, %v207
  %v264 = vpack.c.b16 %v215, %v208
  %v265 = vpack.c.b16 %v223, %v216
  %v266 = vpack.c.b16 %v224, %v217
  %v267 = vpack.c.b16 %v225, %v218
  %v268 = vpack.c.b16 %v226, %v219
  %v269 = vpack.c.b16 %v227, %v220
  %v270 = vpack.c.b16 %v228, %v221
  %v271 = vpack.c.b16 %v229, %v222
  %v272 = vpack.c.b16 %v237, %v230
  %v273 = vpack.c.b16 %v238, %v231
  %v274 = vpack.c.b16 %v239, %v232
  %v275 = vpack.c.b16 %v240, %v233
  %v276 = vpack.c.b16 %v241, %v234
  %v277 = vpack.c.b16 %v242, %v235
  %v278 = vpack.c.b16 %v243, %v236
  %v279 = vpack.c.b16 %v251, %v244
  %v280 = vpack.c.b16 %v252, %v245
  %v281 = vpack.c.b16 %v253, %v246
  %v282 = vpack.c.b16 %v254, %v247
  %v283 = vpack.c.b16 %v255, %v248
  %v284 = vpack.c.b16 %v256, %v249
  %v285 = vpack.c.b16 %v257, %v250
  %v408 = vunpack.c.l.b16 %v65
  %v409 = vunpack.c.l.b16 %v66
  %v410 = vunpack.c.l.b16 %v67
  %v411 = vunpack.c.l.b16 %v68
  %v412 = vunpack.c.l.b16 %v69
  %v413 = vunpack.c.l.b16 %v70
  %v414 = vunpack.c.l.b16 %v71
  %v415 = vunpack.c.l.b16 %v72
  %v416 = vunpack.c.l.b16 %v73
  %v417 = vunpack.c.l.b16 %v74
  %v418 = vunpack.c.l.b16 %v75
  %v419 = vunpack.c.l.b16 %v76
  %v420 = vunpack.c.l.b16 %v77
  %v421 = vunpack.c.l.b16 %v78
  %v422 = vunpack.c.l.b16 %v79
  %v423 = vunpack.c.l.b16 %v80
  %v424 = vunpack.c.l.b16 %v81
  %v425 = vunpack.c.l.b16 %v82
  %v426 = vunpack.c.l.b16 %v83
  %v427 = vunpack.c.l.b16 %v84
  %v428 = vunpack.c.l.b16 %v85
  %v429 = vunpack.c.l.b16 %v86
  %v430 = vunpack.c.l.b16 %v87
  %v431 = vunpack.c.l.b16 %v88
  %v432 = vunpack.c.l.b16 %v89
  %v433 = vunpack.c.l.b16 %v90
  %v434 = vunpack.c.l.b16 %v91
  %v435 = vunpack.c.l.b16 %v92
  %v436 = vunpack.c.l.b16 %v93
  %v437 = vunpack.c.l.b16 %v94
  %v438 = vunpack.c.l.b16 %v95
  %v439 = vunpack.c.l.b16 %v96
  %v440 = vunpack.c.l.b16 %v97
  %v441 = vunpack.c.l.b16 %v98
  %v442 = vunpack.c.l.b16 %v99
  %v443 = vunpack.c.l.b16 %v100
  %v444 = vunpack.c.l.b16 %v101
  %v445 = vunpack.c.l.b16 %v102
  %v446 = vunpack.c.l.b16 %v103
  %v447 = vunpack.c.l.b16 %v104
  %v448 = vunpack.c.l.b16 %v105
  %v449 = vunpack.c.l.b16 %v106
  %v450 = vunpack.c.l.b16 %v107
  %v451 = vunpack.c.l.b16 %v108
  %v452 = vunpack.c.l.b16 %v109
  %v453 = vunpack.c.l.b16 %v110
  %v454 = vunpack.c.l.b16 %v111
  %v455 = vunpack.c.l.b16 %v112
  %v456 = vunpack.c.l.b16 %v113
  %v457 = vunpack.c.l.b16 %v114
  %v458 = vunpack.c.l.b16 %v115
  %v459 = vunpack.c.l.b16 %v116
  %v460 = vunpack.c.l.b16 %v117
  %v461 = vunpack.c.l.b16 %v118
  %v462 = vunpack.c.l.b16 %v119
  %v463 = vunpack.c.l.b16 %v120
  %v464 = vunpack.c.l.b16 %v121
  %v465 = vunpack.c.l.b16 %v122
  %v466 = vunpack.c.l.b16 %v123
  %v467 = vunpack.c.l.b16 %v124
  %v468 = vunpack.c.l.b16 %v125
  %v469 = vunpack.c.l.b16 %v126
  %v470 = vunpack.c.l.b16 %v127
  %v471 = vunpack.c.l.b16 %v128
  %v472 = vunpack.c.l.b16 %v129
  %v473 = vunpack.c.l.b16 %v130
  %v474 = vunpack.c.l.b16 %v131
  %v475 = vunpack.c.l.b16 %v132
  %v476 = vunpack.c.l.b16 %v133
  %v477 = vunpack.c.l.b16 %v134
  %v478 = vunpack.c.l.b16 %v135
  %v479 = vunpack.c.l.b16 %v136
  %v480 = vunpack.c.l.b16 %v137
  %v481 = vunpack.c.l.b16 %v138
  %v482 = vunpack.c.l.b16 %v139
  %v483 = vunpack.c.l.b16 %v140
  %v484 = vunpack.c.l.b16 %v141
  %v485 = vunpack.c.l.b16 %v142
  %v486 = vunpack.c.l.b16 %v143
  %v487 = vunpack.c.l.b16 %v144
  %v488 = vunpack.c.l.b16 %v145
  %v489 = vunpack.c.l.b16 %v146
  %v490 = vunpack.c.l.b16 %v147
  %v491 = vunpack.c.l.b16 %v148
  %v492 = vunpack.c.l.b16 %v149
  %v493 = vunpack.c.l.b16 %v150
  %v494 = vunpack.c.l.b16 %v151
  %v495 = vunpack.c.l.b16 %v152
  %v496 = vunpack.c.l.b16 %v153
  %v497 = vunpack.c.l.b16 %v154
  %v498 = vunpack.c.l.b16 %v155
  %v499 = vunpack.c.l.b16 %v156
  %v500 = vunpack.c.l.b16 %v157
  %v501 = vunpack.c.l.b16 %v158
  %v502 = vunpack.c.l.b16 %v159
  %v503 = vunpack.c.l.b16 %v160
  %v504 = vunpack.c.l.b16 %v161
  %v505 = vunpack.c.l.b16 %v162
  %v506 = vpack.c.b16 %v409, %v408
  %v507 = vpack.c.b16 %v411, %v410
  %v508 = vpack.c.b16 %v413, %v412
  %v509 = vpack.c.b16 %v415, %v414
  %v510 = vpack.c.b16 %v417, %v416
  %v511 = vpack.c.b16 %v419, %v418
  %v512 = vpack.c.b16 %v421, %v420
  %v513 = vpack.c.b16 %v423, %v422
  %v514 = vpack.c.b16 %v425, %v424
  %v515 = vpack.c.b16 %v427, %v426
  %v516 = vpack.c.b16 %v429, %v428
  %v517 = vpack.c.b16 %v431, %v430
  %v518 = vpack.c.b16 %v433, %v432
  %v519 = vpack.c.b16 %v435, %v434
  %v520 = vpack.c.b16 %v437, %v436
  %v521 = vpack.c.b16 %v439, %v438
  %v522 = vpack.c.b16 %v441, %v440
  %v523 = vpack.c.b16 %v443, %v442
  %v524 = vpack.c.b16 %v445, %v444
  %v525 = vpack.c.b16 %v447, %v446
  %v526 = vpack.c.b16 %v449, %v448
  %v527 = vpack.c.b16 %v451, %v450
  %v528 = vpack.c.b16 %v453, %v452
  %v529 = vpack.c.b16 %v455, %v454
  %v530 = vpack.c.b16 %v457, %v456
  %v531 = vpack.c.b16 %v459, %v458
  %v532 = vpack.c.b16 %v461, %v460
  %v533 = vpack.c.b16 %v463, %v462
  %v534 = vpack.c.b16 %v465, %v464
  %v535 = vpack.c.b16 %v467, %v466
  %v536 = vpack.c.b16 %v469, %v468
  %v537 = vpack.c.b16 %v471, %v470
  %v538 = vpack.c.b16 %v473, %v472
  %v539 = vpack.c.b16 %v475, %v474
  %v540 = vpack.c.b16 %v477, %v476
  %v541 = vpack.c.b16 %v479, %v478
  %v542 = vpack.c.b16 %v481, %v480
  %v543 = vpack.c.b16 %v483, %v482
  %v544 = vpack.c.b16 %v485, %v484
  %v545 = vpack.c.b16 %v487, %v486
  %v546 = vpack.c.b16 %v489, %v488
  %v547 = vpack.c.b16 %v491, %v490
  %v548 = vpack.c.b16 %v493, %v492
  %v549 = vpack.c.b16 %v495, %v494
  %v550 = vpack.c.b16 %v497, %v496
  %v551 = vpack.c.b16 %v499, %v498
  %v552 = vpack.c.b16 %v501, %v500
  %v553 = vpack.c.b16 %v503, %v502
  %v554 = vpack.c.b16 %v505, %v504
  %vm604 = vcmask 130048
  %v606 = vsel %vm604, %v264, 0
  %v609 = vsel %vm604, %v271, 0
  %v612 = vsel %vm604, %v278, 0
  %v615 = vsel %vm604, %v285, 0
  %617 = vmatprep.subr.bf16.mxu0 0
  %618 = vmatpush1.bf16.msra.mxu0 %v513
  %619 = vmatprep.subr.bf16.mxu0 0
  %620 = vmatpush1.bf16.msra.mxu0 %v512
  %621 = vmatprep.subr.bf16.mxu0 0
  %622 = vmatpush1.bf16.msra.mxu0 %v511
  %623 = vmatprep.subr.bf16.mxu0 0
  %624 = vmatpush1.bf16.msra.mxu0 %v510
  %625 = vmatprep.subr.bf16.mxu0 0
  %626 = vmatpush1.bf16.msra.mxu0 %v509
  %627 = vmatprep.subr.bf16.mxu0 0
  %628 = vmatpush1.bf16.msra.mxu0 %v508
  %629 = vmatprep.subr.bf16.mxu0 0
  %630 = vmatpush1.bf16.msra.mxu0 %v507
  %631 = vmatprep.subr.bf16.mxu0 0
  %632 = vmatpush1.bf16.msra.mxu0 %v506
  %633 = vmatprep.subr.bf16.mxu0 0
  %634 = vmatpush2.bf16.msra.mxu0 %v521
  %635 = vmatprep.subr.bf16.mxu0 0
  %636 = vmatpush2.bf16.msra.mxu0 %v520
  %637 = vmatprep.subr.bf16.mxu0 0
  %638 = vmatpush2.bf16.msra.mxu0 %v519
  %639 = vmatprep.subr.bf16.mxu0 0
  %640 = vmatpush2.bf16.msra.mxu0 %v518
  %641 = vmatprep.subr.bf16.mxu0 0
  %642 = vmatpush2.bf16.msra.mxu0 %v517
  %643 = vmatprep.subr.bf16.mxu0 0
  %644 = vmatpush2.bf16.msra.mxu0 %v516
  %645 = vmatprep.subr.bf16.mxu0 0
  %646 = vmatpush2.bf16.msra.mxu0 %v515
  %647 = vmatprep.subr.bf16.mxu0 0
  %648 = vmatpush2.bf16.msra.mxu0 %v514
  %649 = vmatprep.mubr.bf16.mxu0 %v259
  %650 = vmatmul.mubr.bf16.gmra.mxu0 %v258
  %v651 = vpop.f32.mrf.mxu0
  %v652 = vadd.f32 %v168, %v651
  %v653 = vpop.f32.mrf.mxu0
  %v654 = vpop.f32.mrf.mxu0
  %v655 = vadd.f32 %v168, %v654
  %v656 = vpop.f32.mrf.mxu0
  %657 = vmatprep.mubr.bf16.mxu0 %v266
  %658 = vmatmul.mubr.bf16.gmra.mxu0 %v265
  %v659 = vpop.f32.mrf.mxu0
  %v660 = vadd.f32 %v168, %v659
  %v661 = vpop.f32.mrf.mxu0
  %v662 = vpop.f32.mrf.mxu0
  %v663 = vadd.f32 %v168, %v662
  %v664 = vpop.f32.mrf.mxu0
  %665 = vmatprep.mubr.bf16.mxu0 %v273
  %666 = vmatmul.mubr.bf16.gmra.mxu0 %v272
  %v667 = vpop.f32.mrf.mxu0
  %v668 = vadd.f32 %v168, %v667
  %v669 = vpop.f32.mrf.mxu0
  %v670 = vpop.f32.mrf.mxu0
  %v671 = vadd.f32 %v168, %v670
  %v672 = vpop.f32.mrf.mxu0
  %673 = vmatprep.mubr.bf16.mxu0 %v280
  %674 = vmatmul.mubr.bf16.gmra.mxu0 %v279
  %v675 = vpop.f32.mrf.mxu0
  %v676 = vadd.f32 %v168, %v675
  %v677 = vpop.f32.mrf.mxu0
  %v678 = vpop.f32.mrf.mxu0
  %v679 = vadd.f32 %v168, %v678
  %v680 = vpop.f32.mrf.mxu0
  %681 = vdwg.mxu0
  %682 = vmatprep.subr.bf16.mxu0 0
  %683 = vmatpush1.bf16.msra.mxu0 %v529
  %684 = vmatprep.subr.bf16.mxu0 0
  %685 = vmatpush1.bf16.msra.mxu0 %v528
  %686 = vmatprep.subr.bf16.mxu0 0
  %687 = vmatpush1.bf16.msra.mxu0 %v527
  %688 = vmatprep.subr.bf16.mxu0 0
  %689 = vmatpush1.bf16.msra.mxu0 %v526
  %690 = vmatprep.subr.bf16.mxu0 0
  %691 = vmatpush1.bf16.msra.mxu0 %v525
  %692 = vmatprep.subr.bf16.mxu0 0
  %693 = vmatpush1.bf16.msra.mxu0 %v524
  %694 = vmatprep.subr.bf16.mxu0 0
  %695 = vmatpush1.bf16.msra.mxu0 %v523
  %696 = vmatprep.subr.bf16.mxu0 0
  %697 = vmatpush1.bf16.msra.mxu0 %v522
  %698 = vmatprep.subr.bf16.mxu0 0
  %699 = vmatpush2.bf16.msra.mxu0 %v537
  %700 = vmatprep.subr.bf16.mxu0 0
  %701 = vmatpush2.bf16.msra.mxu0 %v536
  %702 = vmatprep.subr.bf16.mxu0 0
  %703 = vmatpush2.bf16.msra.mxu0 %v535
  %704 = vmatprep.subr.bf16.mxu0 0
  %705 = vmatpush2.bf16.msra.mxu0 %v534
  %706 = vmatprep.subr.bf16.mxu0 0
  %707 = vmatpush2.bf16.msra.mxu0 %v533
  %708 = vmatprep.subr.bf16.mxu0 0
  %709 = vmatpush2.bf16.msra.mxu0 %v532
  %710 = vmatprep.subr.bf16.mxu0 0
  %711 = vmatpush2.bf16.msra.mxu0 %v531
  %712 = vmatprep.subr.bf16.mxu0 0
  %713 = vmatpush2.bf16.msra.mxu0 %v530
  %714 = vmatprep.mubr.bf16.mxu0 %v261
  %715 = vmatmul.mubr.bf16.gmra.mxu0 %v260
  %v716 = vpop.f32.mrf.mxu0
  %v717 = vadd.f32 %v652, %v716
  %v718 = vpop.f32.mrf.mxu0
  %v719 = vpop.f32.mrf.mxu0
  %v720 = vadd.f32 %v655, %v719
  %v721 = vpop.f32.mrf.mxu0
  %722 = vmatprep.mubr.bf16.mxu0 %v268
  %723 = vmatmul.mubr.bf16.gmra.mxu0 %v267
  %v724 = vpop.f32.mrf.mxu0
  %v725 = vadd.f32 %v660, %v724
  %v726 = vpop.f32.mrf.mxu0
  %v727 = vpop.f32.mrf.mxu0
  %v728 = vadd.f32 %v663, %v727
  %v729 = vpop.f32.mrf.mxu0
  %730 = vmatprep.mubr.bf16.mxu0 %v275
  %731 = vmatmul.mubr.bf16.gmra.mxu0 %v274
  %v732 = vpop.f32.mrf.mxu0
  %v733 = vadd.f32 %v668, %v732
  %v734 = vpop.f32.mrf.mxu0
  %v735 = vpop.f32.mrf.mxu0
  %v736 = vadd.f32 %v671, %v735
  %v737 = vpop.f32.mrf.mxu0
  %738 = vmatprep.mubr.bf16.mxu0 %v282
  %739 = vmatmul.mubr.bf16.gmra.mxu0 %v281
  %v740 = vpop.f32.mrf.mxu0
  %v741 = vadd.f32 %v676, %v740
  %v742 = vpop.f32.mrf.mxu0
  %v743 = vpop.f32.mrf.mxu0
  %v744 = vadd.f32 %v679, %v743
  %v745 = vpop.f32.mrf.mxu0
  %746 = vdwg.mxu0
  %747 = vmatprep.subr.bf16.mxu0 0
  %748 = vmatpush1.bf16.msra.mxu0 %v545
  %749 = vmatprep.subr.bf16.mxu0 0
  %750 = vmatpush1.bf16.msra.mxu0 %v544
  %751 = vmatprep.subr.bf16.mxu0 0
  %752 = vmatpush1.bf16.msra.mxu0 %v543
  %753 = vmatprep.subr.bf16.mxu0 0
  %754 = vmatpush1.bf16.msra.mxu0 %v542
  %755 = vmatprep.subr.bf16.mxu0 0
  %756 = vmatpush1.bf16.msra.mxu0 %v541
  %757 = vmatprep.subr.bf16.mxu0 0
  %758 = vmatpush1.bf16.msra.mxu0 %v540
  %759 = vmatprep.subr.bf16.mxu0 0
  %760 = vmatpush1.bf16.msra.mxu0 %v539
  %761 = vmatprep.subr.bf16.mxu0 0
  %762 = vmatpush1.bf16.msra.mxu0 %v538
  %763 = vmatprep.subr.bf16.mxu0 0
  %764 = vmatpush2.bf16.msra.mxu0 %v553
  %765 = vmatprep.subr.bf16.mxu0 0
  %766 = vmatpush2.bf16.msra.mxu0 %v552
  %767 = vmatprep.subr.bf16.mxu0 0
  %768 = vmatpush2.bf16.msra.mxu0 %v551
  %769 = vmatprep.subr.bf16.mxu0 0
  %770 = vmatpush2.bf16.msra.mxu0 %v550
  %771 = vmatprep.subr.bf16.mxu0 0
  %772 = vmatpush2.bf16.msra.mxu0 %v549
  %773 = vmatprep.subr.bf16.mxu0 0
  %774 = vmatpush2.bf16.msra.mxu0 %v548
  %775 = vmatprep.subr.bf16.mxu0 0
  %776 = vmatpush2.bf16.msra.mxu0 %v547
  %777 = vmatprep.subr.bf16.mxu0 0
  %778 = vmatpush2.bf16.msra.mxu0 %v546
  %779 = vmatprep.mubr.bf16.mxu0 %v263
  %780 = vmatmul.mubr.bf16.gmra.mxu0 %v262
  %v781 = vpop.f32.mrf.mxu0
  %v782 = vadd.f32 %v717, %v781
  %v783 = vpop.f32.mrf.mxu0
  %v784 = vpop.f32.mrf.mxu0
  %v785 = vadd.f32 %v720, %v784
  %v786 = vpop.f32.mrf.mxu0
  %787 = vmatprep.mubr.bf16.mxu0 %v270
  %788 = vmatmul.mubr.bf16.gmra.mxu0 %v269
  %v789 = vpop.f32.mrf.mxu0
  %v790 = vadd.f32 %v725, %v789
  %v791 = vpop.f32.mrf.mxu0
  %v792 = vpop.f32.mrf.mxu0
  %v793 = vadd.f32 %v728, %v792
  %v794 = vpop.f32.mrf.mxu0
  %795 = vmatprep.mubr.bf16.mxu0 %v277
  %796 = vmatmul.mubr.bf16.gmra.mxu0 %v276
  %v797 = vpop.f32.mrf.mxu0
  %v798 = vadd.f32 %v733, %v797
  %v799 = vpop.f32.mrf.mxu0
  %v800 = vpop.f32.mrf.mxu0
  %v801 = vadd.f32 %v736, %v800
  %v802 = vpop.f32.mrf.mxu0
  %803 = vmatprep.mubr.bf16.mxu0 %v284
  %804 = vmatmul.mubr.bf16.gmra.mxu0 %v283
  %v805 = vpop.f32.mrf.mxu0
  %v806 = vadd.f32 %v741, %v805
  %v807 = vpop.f32.mrf.mxu0
  %v808 = vpop.f32.mrf.mxu0
  %v809 = vadd.f32 %v744, %v808
  %v810 = vpop.f32.mrf.mxu0
  %811 = vdwg.mxu0
  %812 = vmatprep.subr.bf16.mxu0 0
  %813 = vmatpush1.bf16.msra.mxu0 0
  %814 = vmatprep.subr.bf16.mxu0 0
  %815 = vmatpush1.bf16.msra.mxu0 0
  %816 = vmatprep.subr.bf16.mxu0 0
  %817 = vmatpush1.bf16.msra.mxu0 0
  %818 = vmatprep.subr.bf16.mxu0 0
  %819 = vmatpush1.bf16.msra.mxu0 0
  %820 = vmatprep.subr.bf16.mxu0 0
  %821 = vmatpush1.bf16.msra.mxu0 0
  %822 = vmatprep.subr.bf16.mxu0 0
  %823 = vmatpush1.bf16.msra.mxu0 0
  %824 = vmatprep.subr.bf16.mxu0 0
  %825 = vmatpush1.bf16.msra.mxu0 0
  %826 = vmatprep.subr.bf16.mxu0 0
  %827 = vmatpush1.bf16.msra.mxu0 %v554
  %828 = vmatprep.subr.bf16.mxu0 0
  %829 = vmatpush2.bf16.msra.mxu0 0
  %830 = vmatprep.subr.bf16.mxu0 0
  %831 = vmatpush2.bf16.msra.mxu0 0
  %832 = vmatprep.subr.bf16.mxu0 0
  %833 = vmatpush2.bf16.msra.mxu0 0
  %834 = vmatprep.subr.bf16.mxu0 0
  %835 = vmatpush2.bf16.msra.mxu0 0
  %836 = vmatprep.subr.bf16.mxu0 0
  %837 = vmatpush2.bf16.msra.mxu0 0
  %838 = vmatprep.subr.bf16.mxu0 0
  %839 = vmatpush2.bf16.msra.mxu0 0
  %840 = vmatprep.subr.bf16.mxu0 0
  %841 = vmatpush2.bf16.msra.mxu0 0
  %842 = vmatprep.subr.bf16.mxu0 0
  %843 = vmatpush2.bf16.msra.mxu0 0
  %844 = vmatprep.mubr.bf16.mxu0 0
  %845 = vmatmul.mubr.bf16.gmra.mxu0 %v606
  %v846 = vpop.f32.mrf.mxu0
  %v847 = vadd.f32 %v782, %v846
  %v848 = vpop.f32.mrf.mxu0
  %v849 = vpop.f32.mrf.mxu0
  %v850 = vadd.f32 %v785, %v849
  %v851 = vpop.f32.mrf.mxu0
  %852 = vmatprep.mubr.bf16.mxu0 0
  %853 = vmatmul.mubr.bf16.gmra.mxu0 %v609
  %v854 = vpop.f32.mrf.mxu0
  %v855 = vadd.f32 %v790, %v854
  %v856 = vpop.f32.mrf.mxu0
  %v857 = vpop.f32.mrf.mxu0
  %v858 = vadd.f32 %v793, %v857
  %v859 = vpop.f32.mrf.mxu0
  %860 = vmatprep.mubr.bf16.mxu0 0
  %861 = vmatmul.mubr.bf16.gmra.mxu0 %v612
  %v862 = vpop.f32.mrf.mxu0
  %v863 = vadd.f32 %v798, %v862
  %v864 = vpop.f32.mrf.mxu0
  %v865 = vpop.f32.mrf.mxu0
  %v866 = vadd.f32 %v801, %v865
  %v867 = vpop.f32.mrf.mxu0
  %868 = vmatprep.mubr.bf16.mxu0 0
  %869 = vmatmul.mubr.bf16.gmra.mxu0 %v615
  %v870 = vpop.f32.mrf.mxu0
  %v871 = vadd.f32 %v806, %v870
  %v872 = vpop.f32.mrf.mxu0
  %v873 = vpop.f32.mrf.mxu0
  %v874 = vadd.f32 %v809, %v873
  %v875 = vpop.f32.mrf.mxu0
  %876 = vdwg.mxu0
  %v877 = vmax.f32 %v847, 0.0
  %v878 = vmax.f32 %v850, 0.0
  %v879 = vmax.f32 %v855, 0.0
  %v880 = vmax.f32 %v858, 0.0
  %v881 = vmax.f32 %v863, 0.0
  %v882 = vmax.f32 %v866, 0.0
  %v883 = vmax.f32 %v871, 0.0
  %v884 = vmax.f32 %v874, 0.0
  %v885 = vpack.c.bf16 %v878, %v877
  %v886 = vpack.c.bf16 %v880, %v879
  %v887 = vpack.c.bf16 %v882, %v881
  %v888 = vpack.c.bf16 %v884, %v883
  %v889 = vld [vmem:[%s3] sm:$0xf]
  %v890 = vld [vmem:[%s3 + $0x4] sm:$0xf]
  %v891 = vld [vmem:[%s3 + $0x8] sm:$0xf]
  %v892 = vld [vmem:[%s3 + $0xc] sm:$0xf]
  %v893 = vld [vmem:[%s3 + $0x10] sm:$0xf]
  %v894 = vld [vmem:[%s3 + $0x14] sm:$0xf]
  %v895 = vld [vmem:[%s3 + $0x18] sm:$0xf]
  %v896 = vld [vmem:[%s3 + $0x1c] sm:$0xf]
  %v897 = vld [vmem:[%s3 + $0x20] sm:$0xf]
  %v898 = vld [vmem:[%s3 + $0x24] sm:$0xf]
  %v899 = vld [vmem:[%s3 + $0x28] sm:$0xf]
  %v900 = vld [vmem:[%s3 + $0x2c] sm:$0xf]
  %v901 = vld [vmem:[%s3 + $0x30] sm:$0xf]
  %v902 = vld [vmem:[%s3 + $0x34] sm:$0xf]
  %v903 = vld [vmem:[%s3 + $0x38] sm:$0xf]
  %v904 = vld [vmem:[%s3 + $0x3c] sm:$0xf]
  %v905 = vld [vmem:[%s4] sm:$0x1]
  %v907 = vlaneseq
  %v908 = vshrl.u32 %v907, 7
  %v909 = vsub.s32 0, %v908
  %v910 = vrot.slane %v905, %v909
  %v928 = vunpack.c.l.b16 %v889
  %v929 = vunpack.c.l.b16 %v890
  %v930 = vunpack.c.l.b16 %v891
  %v931 = vunpack.c.l.b16 %v892
  %v932 = vunpack.c.l.b16 %v893
  %v933 = vunpack.c.l.b16 %v894
  %v934 = vunpack.c.l.b16 %v895
  %v935 = vunpack.c.l.b16 %v896
  %v936 = vunpack.c.l.b16 %v897
  %v937 = vunpack.c.l.b16 %v898
  %v938 = vunpack.c.l.b16 %v899
  %v939 = vunpack.c.l.b16 %v900
  %v940 = vunpack.c.l.b16 %v901
  %v941 = vunpack.c.l.b16 %v902
  %v942 = vunpack.c.l.b16 %v903
  %v943 = vunpack.c.l.b16 %v904
  %v944 = vpack.c.b16 %v929, %v928
  %v945 = vpack.c.b16 %v931, %v930
  %v946 = vpack.c.b16 %v933, %v932
  %v947 = vpack.c.b16 %v935, %v934
  %v948 = vpack.c.b16 %v937, %v936
  %v949 = vpack.c.b16 %v939, %v938
  %v950 = vpack.c.b16 %v941, %v940
  %v951 = vpack.c.b16 %v943, %v942
  %960 = vmatprep.subr.bf16.mxu0 0
  %961 = vmatpush1.bf16.msra.mxu0 %v951
  %962 = vmatprep.subr.bf16.mxu0 0
  %963 = vmatpush1.bf16.msra.mxu0 %v950
  %964 = vmatprep.subr.bf16.mxu0 0
  %965 = vmatpush1.bf16.msra.mxu0 %v949
  %966 = vmatprep.subr.bf16.mxu0 0
  %967 = vmatpush1.bf16.msra.mxu0 %v948
  %968 = vmatprep.subr.bf16.mxu0 0
  %969 = vmatpush1.bf16.msra.mxu0 %v947
  %970 = vmatprep.subr.bf16.mxu0 0
  %971 = vmatpush1.bf16.msra.mxu0 %v946
  %972 = vmatprep.subr.bf16.mxu0 0
  %973 = vmatpush1.bf16.msra.mxu0 %v945
  %974 = vmatprep.subr.bf16.mxu0 0
  %975 = vmatpush1.bf16.msra.mxu0 %v944
  %976 = vmatprep.subr.bf16.mxu0 0
  %977 = vmatpush2.bf16.msra.mxu0 0
  %978 = vmatprep.subr.bf16.mxu0 0
  %979 = vmatpush2.bf16.msra.mxu0 0
  %980 = vmatprep.subr.bf16.mxu0 0
  %981 = vmatpush2.bf16.msra.mxu0 0
  %982 = vmatprep.subr.bf16.mxu0 0
  %983 = vmatpush2.bf16.msra.mxu0 0
  %984 = vmatprep.subr.bf16.mxu0 0
  %985 = vmatpush2.bf16.msra.mxu0 0
  %986 = vmatprep.subr.bf16.mxu0 0
  %987 = vmatpush2.bf16.msra.mxu0 0
  %988 = vmatprep.subr.bf16.mxu0 0
  %989 = vmatpush2.bf16.msra.mxu0 0
  %990 = vmatprep.subr.bf16.mxu0 0
  %991 = vmatpush2.bf16.msra.mxu0 0
  %992 = vmatprep.mubr.bf16.mxu0 0
  %993 = vmatmul.mubr.bf16.gmra.mxu0 %v885
  %v994 = vpop.f32.mrf.mxu0
  %v995 = vadd.f32 %v910, %v994
  %v996 = vpop.f32.mrf.mxu0
  %v997 = vpop.f32.mrf.mxu0
  %v998 = vadd.f32 %v910, %v997
  %v999 = vpop.f32.mrf.mxu0
  %1000 = vmatprep.mubr.bf16.mxu0 0
  %1001 = vmatmul.mubr.bf16.gmra.mxu0 %v886
  %v1002 = vpop.f32.mrf.mxu0
  %v1003 = vadd.f32 %v910, %v1002
  %v1004 = vpop.f32.mrf.mxu0
  %v1005 = vpop.f32.mrf.mxu0
  %v1006 = vadd.f32 %v910, %v1005
  %v1007 = vpop.f32.mrf.mxu0
  %1008 = vmatprep.mubr.bf16.mxu0 0
  %1009 = vmatmul.mubr.bf16.gmra.mxu0 %v887
  %v1010 = vpop.f32.mrf.mxu0
  %v1011 = vadd.f32 %v910, %v1010
  %v1012 = vpop.f32.mrf.mxu0
  %v1013 = vpop.f32.mrf.mxu0
  %v1014 = vadd.f32 %v910, %v1013
  %v1015 = vpop.f32.mrf.mxu0
  %1016 = vmatprep.mubr.bf16.mxu0 0
  %1017 = vmatmul.mubr.bf16.gmra.mxu0 %v888
  %v1018 = vpop.f32.mrf.mxu0
  %v1019 = vadd.f32 %v910, %v1018
  %v1020 = vpop.f32.mrf.mxu0
  %v1021 = vpop.f32.mrf.mxu0
  %v1022 = vadd.f32 %v910, %v1021
  %v1023 = vpop.f32.mrf.mxu0
  %1024 = vdwg.mxu0
  %v1025 = vmax.f32 %v995, 0.0
  %v1026 = vmax.f32 %v998, 0.0
  %v1027 = vmax.f32 %v1003, 0.0
  %v1028 = vmax.f32 %v1006, 0.0
  %v1029 = vmax.f32 %v1011, 0.0
  %v1030 = vmax.f32 %v1014, 0.0
  %v1031 = vmax.f32 %v1019, 0.0
  %v1032 = vmax.f32 %v1022, 0.0
  %v1033 = vpack.c.bf16 %v1026, %v1025
  %v1034 = vpack.c.bf16 %v1028, %v1027
  %v1035 = vpack.c.bf16 %v1030, %v1029
  %v1036 = vpack.c.bf16 %v1032, %v1031
  %v1037 = vld [vmem:[%s5] sm:$0xf]
  %v1038 = vld [vmem:[%s5 + $0x4] sm:$0xf]
  %v1039 = vld [vmem:[%s5 + $0x8] sm:$0xf]
  %v1040 = vld [vmem:[%s5 + $0xc] sm:$0xf]
  %v1041 = vld [vmem:[%s5 + $0x10] sm:$0xf]
  %v1042 = vld [vmem:[%s5 + $0x14] sm:$0xf]
  %v1043 = vld [vmem:[%s5 + $0x18] sm:$0xf]
  %v1044 = vld [vmem:[%s5 + $0x1c] sm:$0xf]
  %v1045 = vld [vmem:[%s5 + $0x20] sm:$0xf]
  %v1046 = vld [vmem:[%s5 + $0x24] sm:$0xf]
  %v1047 = vld [vmem:[%s5 + $0x28] sm:$0xf]
  %v1048 = vld [vmem:[%s5 + $0x2c] sm:$0xf]
  %v1049 = vld [vmem:[%s5 + $0x30] sm:$0xf]
  %v1050 = vld [vmem:[%s5 + $0x34] sm:$0xf]
  %v1051 = vld [vmem:[%s5 + $0x38] sm:$0xf]
  %v1052 = vld [vmem:[%s5 + $0x3c] sm:$0xf]
  %v1053 = vld [vmem:[%s6] sm:$0x1]
  %v1055 = vlaneseq
  %v1056 = vshrl.u32 %v1055, 7
  %v1057 = vsub.s32 0, %v1056
  %v1058 = vrot.slane %v1053, %v1057
  %v1076 = vunpack.c.l.b16 %v1037
  %v1077 = vunpack.c.l.b16 %v1038
  %v1078 = vunpack.c.l.b16 %v1039
  %v1079 = vunpack.c.l.b16 %v1040
  %v1080 = vunpack.c.l.b16 %v1041
  %v1081 = vunpack.c.l.b16 %v1042
  %v1082 = vunpack.c.l.b16 %v1043
  %v1083 = vunpack.c.l.b16 %v1044
  %v1084 = vunpack.c.l.b16 %v1045
  %v1085 = vunpack.c.l.b16 %v1046
  %v1086 = vunpack.c.l.b16 %v1047
  %v1087 = vunpack.c.l.b16 %v1048
  %v1088 = vunpack.c.l.b16 %v1049
  %v1089 = vunpack.c.l.b16 %v1050
  %v1090 = vunpack.c.l.b16 %v1051
  %v1091 = vunpack.c.l.b16 %v1052
  %v1092 = vpack.c.b16 %v1077, %v1076
  %v1093 = vpack.c.b16 %v1079, %v1078
  %v1094 = vpack.c.b16 %v1081, %v1080
  %v1095 = vpack.c.b16 %v1083, %v1082
  %v1096 = vpack.c.b16 %v1085, %v1084
  %v1097 = vpack.c.b16 %v1087, %v1086
  %v1098 = vpack.c.b16 %v1089, %v1088
  %v1099 = vpack.c.b16 %v1091, %v1090
  %1108 = vmatprep.subr.bf16.mxu0 0
  %1109 = vmatpush1.bf16.msra.mxu0 %v1099
  %1110 = vmatprep.subr.bf16.mxu0 0
  %1111 = vmatpush1.bf16.msra.mxu0 %v1098
  %1112 = vmatprep.subr.bf16.mxu0 0
  %1113 = vmatpush1.bf16.msra.mxu0 %v1097
  %1114 = vmatprep.subr.bf16.mxu0 0
  %1115 = vmatpush1.bf16.msra.mxu0 %v1096
  %1116 = vmatprep.subr.bf16.mxu0 0
  %1117 = vmatpush1.bf16.msra.mxu0 %v1095
  %1118 = vmatprep.subr.bf16.mxu0 0
  %1119 = vmatpush1.bf16.msra.mxu0 %v1094
  %1120 = vmatprep.subr.bf16.mxu0 0
  %1121 = vmatpush1.bf16.msra.mxu0 %v1093
  %1122 = vmatprep.subr.bf16.mxu0 0
  %1123 = vmatpush1.bf16.msra.mxu0 %v1092
  %1124 = vmatprep.subr.bf16.mxu0 0
  %1125 = vmatpush2.bf16.msra.mxu0 0
  %1126 = vmatprep.subr.bf16.mxu0 0
  %1127 = vmatpush2.bf16.msra.mxu0 0
  %1128 = vmatprep.subr.bf16.mxu0 0
  %1129 = vmatpush2.bf16.msra.mxu0 0
  %1130 = vmatprep.subr.bf16.mxu0 0
  %1131 = vmatpush2.bf16.msra.mxu0 0
  %1132 = vmatprep.subr.bf16.mxu0 0
  %1133 = vmatpush2.bf16.msra.mxu0 0
  %1134 = vmatprep.subr.bf16.mxu0 0
  %1135 = vmatpush2.bf16.msra.mxu0 0
  %1136 = vmatprep.subr.bf16.mxu0 0
  %1137 = vmatpush2.bf16.msra.mxu0 0
  %1138 = vmatprep.subr.bf16.mxu0 0
  %1139 = vmatpush2.bf16.msra.mxu0 0
  %1140 = vmatprep.mubr.bf16.mxu0 0
  %1141 = vmatmul.mubr.bf16.gmra.mxu0 %v1033
  %v1142 = vpop.f32.mrf.mxu0
  %v1143 = vadd.f32 %v1058, %v1142
  %v1144 = vpop.f32.mrf.mxu0
  %v1145 = vpop.f32.mrf.mxu0
  %v1146 = vadd.f32 %v1058, %v1145
  %v1147 = vpop.f32.mrf.mxu0
  %1148 = vmatprep.mubr.bf16.mxu0 0
  %1149 = vmatmul.mubr.bf16.gmra.mxu0 %v1034
  %v1150 = vpop.f32.mrf.mxu0
  %v1151 = vadd.f32 %v1058, %v1150
  %v1152 = vpop.f32.mrf.mxu0
  %v1153 = vpop.f32.mrf.mxu0
  %v1154 = vadd.f32 %v1058, %v1153
  %v1155 = vpop.f32.mrf.mxu0
  %1156 = vmatprep.mubr.bf16.mxu0 0
  %1157 = vmatmul.mubr.bf16.gmra.mxu0 %v1035
  %v1158 = vpop.f32.mrf.mxu0
  %v1159 = vadd.f32 %v1058, %v1158
  %v1160 = vpop.f32.mrf.mxu0
  %v1161 = vpop.f32.mrf.mxu0
  %v1162 = vadd.f32 %v1058, %v1161
  %v1163 = vpop.f32.mrf.mxu0
  %1164 = vmatprep.mubr.bf16.mxu0 0
  %1165 = vmatmul.mubr.bf16.gmra.mxu0 %v1036
  %v1166 = vpop.f32.mrf.mxu0
  %v1167 = vadd.f32 %v1058, %v1166
  %v1168 = vpop.f32.mrf.mxu0
  %v1169 = vpop.f32.mrf.mxu0
  %v1170 = vadd.f32 %v1058, %v1169
  %v1171 = vpop.f32.mrf.mxu0
  %1172 = vdwg.mxu0
  %v1173 = vmax.f32 %v1143, 0.0
  %v1174 = vmax.f32 %v1146, 0.0
  %v1175 = vmax.f32 %v1151, 0.0
  %v1176 = vmax.f32 %v1154, 0.0
  %v1177 = vmax.f32 %v1159, 0.0
  %v1178 = vmax.f32 %v1162, 0.0
  %v1179 = vmax.f32 %v1167, 0.0
  %v1180 = vmax.f32 %v1170, 0.0
  %v1181 = vpack.c.bf16 %v1174, %v1173
  %v1182 = vpack.c.bf16 %v1176, %v1175
  %v1183 = vpack.c.bf16 %v1178, %v1177
  %v1184 = vpack.c.bf16 %v1180, %v1179
  %v1185 = vld [vmem:[%s7] sm:$0xf]
  %v1186 = vld [vmem:[%s7 + $0x4] sm:$0xf]
  %v1187 = vld [vmem:[%s7 + $0x8] sm:$0xf]
  %v1188 = vld [vmem:[%s7 + $0xc] sm:$0xf]
  %v1189 = vld [vmem:[%s7 + $0x10] sm:$0xf]
  %v1190 = vld [vmem:[%s7 + $0x14] sm:$0xf]
  %v1191 = vld [vmem:[%s7 + $0x18] sm:$0xf]
  %v1192 = vld [vmem:[%s7 + $0x1c] sm:$0xf]
  %v1193 = vld [vmem:[%s7 + $0x20] sm:$0xf]
  %v1194 = vld [vmem:[%s7 + $0x24] sm:$0xf]
  %v1195 = vld [vmem:[%s7 + $0x28] sm:$0xf]
  %v1196 = vld [vmem:[%s7 + $0x2c] sm:$0xf]
  %v1197 = vld [vmem:[%s7 + $0x30] sm:$0xf]
  %v1198 = vld [vmem:[%s7 + $0x34] sm:$0xf]
  %v1199 = vld [vmem:[%s7 + $0x38] sm:$0xf]
  %v1200 = vld [vmem:[%s7 + $0x3c] sm:$0xf]
  %v1201 = vld [vmem:[%s8] sm:$0x1]
  %v1203 = vlaneseq
  %v1204 = vshrl.u32 %v1203, 7
  %v1205 = vsub.s32 0, %v1204
  %v1206 = vrot.slane %v1201, %v1205
  %v1224 = vunpack.c.l.b16 %v1185
  %v1225 = vunpack.c.l.b16 %v1186
  %v1226 = vunpack.c.l.b16 %v1187
  %v1227 = vunpack.c.l.b16 %v1188
  %v1228 = vunpack.c.l.b16 %v1189
  %v1229 = vunpack.c.l.b16 %v1190
  %v1230 = vunpack.c.l.b16 %v1191
  %v1231 = vunpack.c.l.b16 %v1192
  %v1232 = vunpack.c.l.b16 %v1193
  %v1233 = vunpack.c.l.b16 %v1194
  %v1234 = vunpack.c.l.b16 %v1195
  %v1235 = vunpack.c.l.b16 %v1196
  %v1236 = vunpack.c.l.b16 %v1197
  %v1237 = vunpack.c.l.b16 %v1198
  %v1238 = vunpack.c.l.b16 %v1199
  %v1239 = vunpack.c.l.b16 %v1200
  %v1240 = vpack.c.b16 %v1225, %v1224
  %v1241 = vpack.c.b16 %v1227, %v1226
  %v1242 = vpack.c.b16 %v1229, %v1228
  %v1243 = vpack.c.b16 %v1231, %v1230
  %v1244 = vpack.c.b16 %v1233, %v1232
  %v1245 = vpack.c.b16 %v1235, %v1234
  %v1246 = vpack.c.b16 %v1237, %v1236
  %v1247 = vpack.c.b16 %v1239, %v1238
  %1256 = vmatprep.subr.bf16.mxu0 0
  %1257 = vmatpush1.bf16.msra.mxu0 %v1247
  %1258 = vmatprep.subr.bf16.mxu0 0
  %1259 = vmatpush1.bf16.msra.mxu0 %v1246
  %1260 = vmatprep.subr.bf16.mxu0 0
  %1261 = vmatpush1.bf16.msra.mxu0 %v1245
  %1262 = vmatprep.subr.bf16.mxu0 0
  %1263 = vmatpush1.bf16.msra.mxu0 %v1244
  %1264 = vmatprep.subr.bf16.mxu0 0
  %1265 = vmatpush1.bf16.msra.mxu0 %v1243
  %1266 = vmatprep.subr.bf16.mxu0 0
  %1267 = vmatpush1.bf16.msra.mxu0 %v1242
  %1268 = vmatprep.subr.bf16.mxu0 0
  %1269 = vmatpush1.bf16.msra.mxu0 %v1241
  %1270 = vmatprep.subr.bf16.mxu0 0
  %1271 = vmatpush1.bf16.msra.mxu0 %v1240
  %1272 = vmatprep.subr.bf16.mxu0 0
  %1273 = vmatpush2.bf16.msra.mxu0 0
  %1274 = vmatprep.subr.bf16.mxu0 0
  %1275 = vmatpush2.bf16.msra.mxu0 0
  %1276 = vmatprep.subr.bf16.mxu0 0
  %1277 = vmatpush2.bf16.msra.mxu0 0
  %1278 = vmatprep.subr.bf16.mxu0 0
  %1279 = vmatpush2.bf16.msra.mxu0 0
  %1280 = vmatprep.subr.bf16.mxu0 0
  %1281 = vmatpush2.bf16.msra.mxu0 0
  %1282 = vmatprep.subr.bf16.mxu0 0
  %1283 = vmatpush2.bf16.msra.mxu0 0
  %1284 = vmatprep.subr.bf16.mxu0 0
  %1285 = vmatpush2.bf16.msra.mxu0 0
  %1286 = vmatprep.subr.bf16.mxu0 0
  %1287 = vmatpush2.bf16.msra.mxu0 0
  %1288 = vmatprep.mubr.bf16.mxu0 0
  %1289 = vmatmul.mubr.bf16.gmra.mxu0 %v1181
  %v1290 = vpop.f32.mrf.mxu0
  %v1291 = vadd.f32 %v1206, %v1290
  %v1292 = vpop.f32.mrf.mxu0
  %v1293 = vpop.f32.mrf.mxu0
  %v1294 = vadd.f32 %v1206, %v1293
  %v1295 = vpop.f32.mrf.mxu0
  %1296 = vmatprep.mubr.bf16.mxu0 0
  %1297 = vmatmul.mubr.bf16.gmra.mxu0 %v1182
  %v1298 = vpop.f32.mrf.mxu0
  %v1299 = vadd.f32 %v1206, %v1298
  %v1300 = vpop.f32.mrf.mxu0
  %v1301 = vpop.f32.mrf.mxu0
  %v1302 = vadd.f32 %v1206, %v1301
  %v1303 = vpop.f32.mrf.mxu0
  %1304 = vmatprep.mubr.bf16.mxu0 0
  %1305 = vmatmul.mubr.bf16.gmra.mxu0 %v1183
  %v1306 = vpop.f32.mrf.mxu0
  %v1307 = vadd.f32 %v1206, %v1306
  %v1308 = vpop.f32.mrf.mxu0
  %v1309 = vpop.f32.mrf.mxu0
  %v1310 = vadd.f32 %v1206, %v1309
  %v1311 = vpop.f32.mrf.mxu0
  %1312 = vmatprep.mubr.bf16.mxu0 0
  %1313 = vmatmul.mubr.bf16.gmra.mxu0 %v1184
  %v1314 = vpop.f32.mrf.mxu0
  %v1315 = vadd.f32 %v1206, %v1314
  %v1316 = vpop.f32.mrf.mxu0
  %v1317 = vpop.f32.mrf.mxu0
  %v1318 = vadd.f32 %v1206, %v1317
  %v1319 = vpop.f32.mrf.mxu0
  %1320 = vdwg.mxu0
  %v1321 = vmax.f32 %v1291, 0.0
  %v1322 = vmax.f32 %v1294, 0.0
  %v1323 = vmax.f32 %v1299, 0.0
  %v1324 = vmax.f32 %v1302, 0.0
  %v1325 = vmax.f32 %v1307, 0.0
  %v1326 = vmax.f32 %v1310, 0.0
  %v1327 = vmax.f32 %v1315, 0.0
  %v1328 = vmax.f32 %v1318, 0.0
  %v1329 = vlaneseq
  %v1330 = vand.u32 %v1329, 127
  %vm1331 = vcmp.lt.s32.totalorder %v1330, 10
  %v1332 = vsel %vm1331, %v1321, -1e+30
  %v1333 = vsel %vm1331, %v1322, -1e+30
  %v1334 = vsel %vm1331, %v1323, -1e+30
  %v1335 = vsel %vm1331, %v1324, -1e+30
  %v1336 = vsel %vm1331, %v1325, -1e+30
  %v1337 = vsel %vm1331, %v1326, -1e+30
  %v1338 = vsel %vm1331, %v1327, -1e+30
  %v1339 = vsel %vm1331, %v1328, -1e+30
  %1340 = vmax.xlane.f32.xlu0 %v1332
  %v1341 = vpop.xlane.xlu0 %1340
  %1342 = vmax.xlane.f32.xlu0 %v1333
  %v1343 = vpop.xlane.xlu0 %1342
  %1344 = vmax.xlane.f32.xlu0 %v1334
  %v1345 = vpop.xlane.xlu0 %1344
  %1346 = vmax.xlane.f32.xlu0 %v1335
  %v1347 = vpop.xlane.xlu0 %1346
  %1348 = vmax.xlane.f32.xlu0 %v1336
  %v1349 = vpop.xlane.xlu0 %1348
  %1350 = vmax.xlane.f32.xlu0 %v1337
  %v1351 = vpop.xlane.xlu0 %1350
  %1352 = vmax.xlane.f32.xlu0 %v1338
  %v1353 = vpop.xlane.xlu0 %1352
  %1354 = vmax.xlane.f32.xlu0 %v1339
  %v1355 = vpop.xlane.xlu0 %1354
  %v1356 = vsub.f32 %v1332, %v1341
  %v1357 = vsub.f32 %v1333, %v1343
  %v1358 = vsub.f32 %v1334, %v1345
  %v1359 = vsub.f32 %v1335, %v1347
  %v1360 = vsub.f32 %v1336, %v1349
  %v1361 = vsub.f32 %v1337, %v1351
  %v1362 = vsub.f32 %v1338, %v1353
  %v1363 = vsub.f32 %v1339, %v1355
  %v1364 = vmul.f32 %v1356, 1.442695
  %v1365 = vpow.pop %v1364
  %v1366 = vmul.f32 %v1357, 1.442695
  %v1367 = vpow.pop %v1366
  %v1368 = vmul.f32 %v1358, 1.442695
  %v1369 = vpow.pop %v1368
  %v1370 = vmul.f32 %v1359, 1.442695
  %v1371 = vpow.pop %v1370
  %v1372 = vmul.f32 %v1360, 1.442695
  %v1373 = vpow.pop %v1372
  %v1374 = vmul.f32 %v1361, 1.442695
  %v1375 = vpow.pop %v1374
  %v1376 = vmul.f32 %v1362, 1.442695
  %v1377 = vpow.pop %v1376
  %v1378 = vmul.f32 %v1363, 1.442695
  %v1379 = vpow.pop %v1378
  %1380 = vadd.xlane.f32.xlu0 %v1365
  %v1381 = vpop.xlane.xlu0 %1380
  %1382 = vadd.xlane.f32.xlu0 %v1367
  %v1383 = vpop.xlane.xlu0 %1382
  %1384 = vadd.xlane.f32.xlu0 %v1369
  %v1385 = vpop.xlane.xlu0 %1384
  %1386 = vadd.xlane.f32.xlu0 %v1371
  %v1387 = vpop.xlane.xlu0 %1386
  %1388 = vadd.xlane.f32.xlu0 %v1373
  %v1389 = vpop.xlane.xlu0 %1388
  %1390 = vadd.xlane.f32.xlu0 %v1375
  %v1391 = vpop.xlane.xlu0 %1390
  %1392 = vadd.xlane.f32.xlu0 %v1377
  %v1393 = vpop.xlane.xlu0 %1392
  %1394 = vadd.xlane.f32.xlu0 %v1379
  %v1395 = vpop.xlane.xlu0 %1394
  %v1396 = vlog2.pop %v1381
  %v1397 = vmul.f32 %v1396, 0.6931472
  %v1398 = vlog2.pop %v1383
  %v1399 = vmul.f32 %v1398, 0.6931472
  %v1400 = vlog2.pop %v1385
  %v1401 = vmul.f32 %v1400, 0.6931472
  %v1402 = vlog2.pop %v1387
  %v1403 = vmul.f32 %v1402, 0.6931472
  %v1404 = vlog2.pop %v1389
  %v1405 = vmul.f32 %v1404, 0.6931472
  %v1406 = vlog2.pop %v1391
  %v1407 = vmul.f32 %v1406, 0.6931472
  %v1408 = vlog2.pop %v1393
  %v1409 = vmul.f32 %v1408, 0.6931472
  %v1410 = vlog2.pop %v1395
  %v1411 = vmul.f32 %v1410, 0.6931472
  %v1412 = vsub.f32 %v1356, %v1397
  %v1413 = vsub.f32 %v1357, %v1399
  %v1414 = vsub.f32 %v1358, %v1401
  %v1415 = vsub.f32 %v1359, %v1403
  %v1416 = vsub.f32 %v1360, %v1405
  %v1417 = vsub.f32 %v1361, %v1407
  %v1418 = vsub.f32 %v1362, %v1409
  %v1419 = vsub.f32 %v1363, %v1411
  %1420 = vst [vmem:[%s9] sm:$0xff] %v1412
  %1421 = vst [vmem:[%s9 + $0x8] sm:$0xff] %v1413
  %1422 = vst [vmem:[%s9 + $0x10] sm:$0xff] %v1414
  %1423 = vst [vmem:[%s9 + $0x18] sm:$0xff] %v1415
  %1424 = vst [vmem:[%s9 + $0x20] sm:$0xff] %v1416
  %1425 = vst [vmem:[%s9 + $0x28] sm:$0xff] %v1417
  %1426 = vst [vmem:[%s9 + $0x30] sm:$0xff] %v1418
  %1427 = vst [vmem:[%s9 + $0x38] sm:$0xff] %v1419
  // Predicated region
  $region38: #{net_forward.1} parent=0 // pred_check
    _
  $region39: #{net_forward.1} parent=0 // pred_check_branch
    %1429 = sbr.rel (0) target = $region41
  $region40: #{net_forward.1} parent=0 // pred_region
    _
  $region41: #{net_forward.1} parent=0 // pred_fallthru
    _
  // Predicated region
  $region42: #{net_forward.1} parent=0 // pred_check
    _
  $region43: #{net_forward.1} parent=0 // pred_check_branch
    %1431 = sbr.rel (0) target = $region45
  $region44: #{net_forward.1} parent=0 // pred_region
    _
  $region45: #{net_forward.1} parent=0 // pred_fallthru
    _

</llo_original>
